<compile_context>
chip_gen: v5e
topology: v5e:2x2
jax: 0.10.0
libtpu: 0.0.40
codegen_flags: <defaults>
</compile_context>

<pallas_src>
import functools
import math

import jax
import jax.numpy as jnp
from jax.experimental import pallas as pl
from jax.experimental.pallas import tpu as pltpu


def _resblock_kernel(x_ref, w1_ref, b1_ref, w2_ref, b2_ref, o_ref, *,
                     width, c_mid):
    """One (batch, spatial-tile) block in channels-major (Cin, N) layout."""
    x = x_ref[0]                                     # (Cin, N), native dtype
    n = x.shape[1]

    # ReLU #1
    a = jnp.maximum(x, 0)

    # conv (1,3): single fused MXU matmul, taps stacked on the output-channel
    # (sublane) axis: (3*Cmid, Cin) @ (Cin, N) -> (3*Cmid, N), f32 accumulate.
    taps = jnp.dot(w1_ref[...], a, preferred_element_type=jnp.float32)
    t0 = taps[0 * c_mid:1 * c_mid]                   # tap applied at w-1
    t1 = taps[1 * c_mid:2 * c_mid]                   # tap applied at w
    t2 = taps[2 * c_mid:3 * c_mid]                   # tap applied at w+1

    # out[w] = t0[w-1] + t1[w] + t2[w+1]; shifts along the flattened spatial
    # (lane) axis via XLU rolls, boundary taps masked to zero (matches the
    # conv's (0,1) zero padding).  Tiles hold whole W-rows, so `pos % width`
    # is the true within-row position; the masks also kill any wrap-around /
    # cross-row / ragged-tail contamination.
    pos = jax.lax.broadcasted_iota(jnp.int32, (1, n), 1)
    w_in_row = pos % width
    t0s = pltpu.roll(t0, 1, 1)                       # out[i] = t0[i-1]
    t2s = pltpu.roll(t2, n - 1, 1)                   # out[i] = t2[i+1]
    y = (t1
         + jnp.where(w_in_row == 0, 0.0, t0s)
         + jnp.where(w_in_row == width - 1, 0.0, t2s))

    # bias + ReLU #2
    y = jnp.maximum(y + b1_ref[...].astype(jnp.float32), 0.0)

    # conv 1x1 + bias + residual (x reused from the same VMEM tile).
    z = jnp.dot(w2_ref[...].astype(jnp.float32), y,
                preferred_element_type=jnp.float32)
    z = z + b2_ref[...].astype(jnp.float32) + x.astype(jnp.float32)
    o_ref[0] = z.astype(o_ref.dtype)


def resblock_forward(x, conv1_w, conv1_b, conv2_w, conv2_b, *,
                     max_tile_spatial=4096,
                     vmem_limit_bytes=48 * 1024 * 1024):
    """ResBlock forward pass, NCHW in / NCHW out (same as the PyTorch module).

    x:       (B, C_in, H, W)
    conv1_w: (C_mid, C_in, 1, 3)   conv1_b: (C_mid,)
    conv2_w: (C_in, C_mid, 1, 1)   conv2_b: (C_in,)
    """
    B, Cin, H, W = x.shape
    Cmid = conv1_w.shape[0]
    HW = H * W

    # Metadata-only reshape (merges the two contiguous minor dims): no HBM
    # traffic, no transpose.  The kernel works on (Cin, spatial) slabs.
    x_flat = x.reshape(B, Cin, HW)

    # Spatial tile: whole W-rows (so boundary masks line up) and, when tiling,
    # a multiple of 128 lanes for dense stores.  Ragged last tile is fine.
    if HW <= max_tile_spatial:
        tile = HW
    else:
        base = (W * 128) // math.gcd(W, 128)          # lcm(W, 128)
        tile = max(base, (max_tile_spatial // base) * base)
        tile = min(tile, HW)
    n_tiles = pl.cdiv(HW, tile)

    # Weights in matmul layout (tiny, built once).
    w1_cat = jnp.concatenate(
        [conv1_w[:, :, 0, 0], conv1_w[:, :, 0, 1], conv1_w[:, :, 0, 2]],
        axis=0)                                       # (3*Cmid, Cin)
    w2_mat = conv2_w[:, :, 0, 0]                      # (Cin, Cmid)
    b1_col = conv1_b.reshape(Cmid, 1)
    b2_col = conv2_b.reshape(Cin, 1)

    kernel = functools.partial(_resblock_kernel, width=W, c_mid=Cmid)

    itemsize = x.dtype.itemsize
    cost = pl.CostEstimate(
        flops=2 * B * HW * Cin * Cmid * 4,            # 3 taps + 1x1 conv
        transcendentals=0,
        bytes_accessed=2 * B * Cin * HW * itemsize
                       + (w1_cat.size + w2_mat.size + Cmid + Cin) * itemsize)

    out_flat = pl.pallas_call(
        kernel,
        out_shape=jax.ShapeDtypeStruct((B, Cin, HW), x.dtype),
        grid_spec=pltpu.PrefetchScalarGridSpec(
            num_scalar_prefetch=0,
            grid=(B, n_tiles),
            in_specs=[
                pl.BlockSpec((1, Cin, tile), lambda b, t: (b, 0, t)),    # x
                pl.BlockSpec((3 * Cmid, Cin), lambda b, t: (0, 0)),      # conv1 taps
                pl.BlockSpec((Cmid, 1), lambda b, t: (0, 0)),            # conv1 bias
                pl.BlockSpec((Cin, Cmid), lambda b, t: (0, 0)),          # conv2 weight
                pl.BlockSpec((Cin, 1), lambda b, t: (0, 0)),             # conv2 bias
            ],
            out_specs=pl.BlockSpec((1, Cin, tile), lambda b, t: (b, 0, t)),
        ),
        compiler_params=pltpu.CompilerParams(
            # Independent tiles (no carried accumulator) -> both axes parallel.
            dimension_semantics=("parallel", "parallel"),
            vmem_limit_bytes=vmem_limit_bytes,
        ),
        cost_estimate=cost,
    )(x_flat, w1_cat, b1_col, w2_mat, b2_col)

    return out_flat.reshape(B, Cin, H, W)             # free reshape back


def _reference(x, conv1_w, conv1_b, conv2_w, conv2_b):
    """Plain-JAX reference mirroring the PyTorch forward (NCHW / OIHW)."""
    a = jax.nn.relu(x)
    y = jax.lax.conv_general_dilated(
        a, conv1_w, window_strides=(1, 1), padding=((0, 0), (1, 1)),
        dimension_numbers=("NCHW", "OIHW", "NCHW"))
    y = y + conv1_b.reshape(1, -1, 1, 1)
    y = jax.nn.relu(y)
    z = jax.lax.conv_general_dilated(
        y, conv2_w, window_strides=(1, 1), padding=((0, 0), (0, 0)),
        dimension_numbers=("NCHW", "OIHW", "NCHW"))
    z = z + conv2_b.reshape(1, -1, 1, 1)
    return z + x


if __name__ == "__main__":
    key = jax.random.PRNGKey(0)

    # Test 1: realistic VQ-VAE ResBlock shapes (in_channel=128, channel=32).
    B, Cin, Cmid, H, W = 2, 128, 32, 8, 16
    kx, k1, kb1, k2, kb2, kx2 = jax.random.split(key, 6)
    x = jax.random.normal(kx, (B, Cin, H, W), dtype=jnp.float32)
    conv1_w = 0.1 * jax.random.normal(k1, (Cmid, Cin, 1, 3), dtype=jnp.float32)
    conv1_b = 0.1 * jax.random.normal(kb1, (Cmid,), dtype=jnp.float32)
    conv2_w = 0.1 * jax.random.normal(k2, (Cin, Cmid, 1, 1), dtype=jnp.float32)
    conv2_b = 0.1 * jax.random.normal(kb2, (Cin,), dtype=jnp.float32)

    out = resblock_forward(x, conv1_w, conv1_b, conv2_w, conv2_b)
    jax.block_until_ready(out)
    ref = _reference(x, conv1_w, conv1_b, conv2_w, conv2_b)
    assert out.shape == ref.shape, (out.shape, ref.shape)
    assert jnp.allclose(out, ref, atol=1e-4, rtol=1e-4), \
        float(jnp.max(jnp.abs(out - ref)))

    # Test 2: exercises multi-tile + ragged trailing spatial block.
    x2 = jax.random.normal(kx2, (1, Cin, 40, W), dtype=jnp.float32)
    out2 = resblock_forward(x2, conv1_w, conv1_b, conv2_w, conv2_b,
                            max_tile_spatial=256)
    jax.block_until_ready(out2)
    ref2 = _reference(x2, conv1_w, conv1_b, conv2_w, conv2_b)
    assert jnp.allclose(out2, ref2, atol=1e-4, rtol=1e-4), \
        float(jnp.max(jnp.abs(out2 - ref2)))

    print("KERNEL_OK")
</pallas_src>

<mosaic_0001>
module attributes {stable_mosaic.version = 11 : i64} {
  func.func @_resblock_kernel(%arg0: i32, %arg1: i32, %arg2: memref<1x128x128xf32, #tpu.memory_space<vmem>>, %arg3: memref<96x128xf32, #tpu.memory_space<vmem>>, %arg4: memref<32x1xf32, #tpu.memory_space<vmem>>, %arg5: memref<128x32xf32, #tpu.memory_space<vmem>>, %arg6: memref<128x1xf32, #tpu.memory_space<vmem>>, %arg7: memref<1x128x128xf32, #tpu.memory_space<vmem>>) attributes {dimension_semantics = [#tpu.dimension_semantics<parallel>, #tpu.dimension_semantics<parallel>], iteration_bounds = array<i64: 2, 1>, scalar_prefetch = 0 : i64, scratch_operands = 0 : i64, tpu.core_type = #tpu.core_type<tc>, window_params = [{transform_indices = @transform_0, window_bounds = array<i64: 1, 128, 128>}, {pipeline_mode = #tpu.pipeline_mode<synchronous>, transform_indices = @transform_1, window_bounds = array<i64: 96, 128>}, {pipeline_mode = #tpu.pipeline_mode<synchronous>, transform_indices = @transform_2, window_bounds = array<i64: 32, 1>}, {pipeline_mode = #tpu.pipeline_mode<synchronous>, transform_indices = @transform_3, window_bounds = array<i64: 128, 32>}, {pipeline_mode = #tpu.pipeline_mode<synchronous>, transform_indices = @transform_4, window_bounds = array<i64: 128, 1>}, {transform_indices = @transform_5, window_bounds = array<i64: 1, 128, 128>}]} {
    %c0 = arith.constant 0 : index
    %c0_0 = arith.constant 0 : index
    %c0_1 = arith.constant 0 : index
    %0 = vector.load %arg2[%c0, %c0_0, %c0_1] : memref<1x128x128xf32, #tpu.memory_space<vmem>>, vector<1x128x128xf32>
    %1 = vector.shape_cast %0 : vector<1x128x128xf32> to vector<128x128xf32>
    %cst = arith.constant 0.000000e+00 : f32
    %2 = vector.broadcast %cst : f32 to vector<128x128xf32>
    %3 = arith.maximumf %1, %2 : vector<128x128xf32>
    %c0_2 = arith.constant 0 : index
    %c0_3 = arith.constant 0 : index
    %4 = vector.load %arg3[%c0_2, %c0_3] : memref<96x128xf32, #tpu.memory_space<vmem>>, vector<96x128xf32>
    %cst_4 = arith.constant dense<0.000000e+00> : vector<96x128xf32>
    %5 = tpu.matmul %4, %3, %cst_4 {dimension_numbers = #tpu.dot_dimension_numbers<[1], [0], [0], [1], [0, 0, 1, 1], [], []>} : vector<96x128xf32>, vector<128x128xf32>, vector<96x128xf32> -> vector<96x128xf32>
    %6 = vector.extract_strided_slice %5 {offsets = [0, 0], sizes = [32, 128], strides = [1, 1]} : vector<96x128xf32> to vector<32x128xf32>
    %7 = vector.extract_strided_slice %5 {offsets = [32, 0], sizes = [32, 128], strides = [1, 1]} : vector<96x128xf32> to vector<32x128xf32>
    %8 = vector.extract_strided_slice %5 {offsets = [64, 0], sizes = [32, 128], strides = [1, 1]} : vector<96x128xf32> to vector<32x128xf32>
    %9 = tpu.iota {dimensions = array<i32: 1>} : vector<1x128xi32>
    %c16_i32 = arith.constant 16 : i32
    %c0_i32 = arith.constant 0 : i32
    %10 = arith.cmpi eq, %c16_i32, %c0_i32 : i32
    %c1_i32 = arith.constant 1 : i32
    %11 = arith.select %10, %c1_i32, %c16_i32 : i32
    %12 = vector.broadcast %11 : i32 to vector<1x128xi32>
    %13 = arith.remsi %9, %12 : vector<1x128xi32>
    %c0_i32_5 = arith.constant 0 : i32
    %14 = vector.broadcast %c0_i32_5 : i32 to vector<1x128xi32>
    %15 = arith.cmpi ne, %13, %14 : vector<1x128xi32>
    %c0_i32_6 = arith.constant 0 : i32
    %16 = vector.broadcast %c0_i32_6 : i32 to vector<1x128xi32>
    %17 = arith.cmpi slt, %13, %16 : vector<1x128xi32>
    %c0_i32_7 = arith.constant 0 : i32
    %18 = arith.cmpi slt, %11, %c0_i32_7 : i32
    %19 = vector.broadcast %18 : i1 to vector<1x128xi1>
    %20 = vector.broadcast %19 : vector<1x128xi1> to vector<1x128xi1>
    %21 = arith.xori %17, %20 : vector<1x128xi1>
    %22 = arith.andi %21, %15 : vector<1x128xi1>
    %23 = vector.broadcast %11 : i32 to vector<1x128xi32>
    %24 = arith.addi %13, %23 : vector<1x128xi32>
    %25 = arith.select %22, %24, %13 : vector<1x128xi1>, vector<1x128xi32>
    %c1_i32_8 = arith.constant 1 : i32
    %26 = tpu.dynamic_rotate %6 by %c1_i32_8 dim 1 : vector<32x128xf32>, i32 -> vector<32x128xf32>
    %c127_i32 = arith.constant 127 : i32
    %27 = tpu.dynamic_rotate %8 by %c127_i32 dim 1 : vector<32x128xf32>, i32 -> vector<32x128xf32>
    %c0_i32_9 = arith.constant 0 : i32
    %28 = vector.broadcast %c0_i32_9 : i32 to vector<1x128xi32>
    %29 = arith.cmpi eq, %25, %28 : vector<1x128xi32>
    %cst_10 = arith.constant 0.000000e+00 : f32
    %30 = vector.shape_cast %29 : vector<1x128xi1> to vector<1x128xi1>
    %31 = vector.broadcast %30 : vector<1x128xi1> to vector<32x128xi1>
    %32 = vector.broadcast %cst_10 : f32 to vector<32x128xf32>
    %33 = arith.select %31, %32, %26 : vector<32x128xi1>, vector<32x128xf32>
    %34 = arith.addf %7, %33 : vector<32x128xf32>
    %c15_i32 = arith.constant 15 : i32
    %35 = vector.broadcast %c15_i32 : i32 to vector<1x128xi32>
    %36 = arith.cmpi eq, %25, %35 : vector<1x128xi32>
    %cst_11 = arith.constant 0.000000e+00 : f32
    %37 = vector.shape_cast %36 : vector<1x128xi1> to vector<1x128xi1>
    %38 = vector.broadcast %37 : vector<1x128xi1> to vector<32x128xi1>
    %39 = vector.broadcast %cst_11 : f32 to vector<32x128xf32>
    %40 = arith.select %38, %39, %27 : vector<32x128xi1>, vector<32x128xf32>
    %41 = arith.addf %34, %40 : vector<32x128xf32>
    %c0_12 = arith.constant 0 : index
    %c0_13 = arith.constant 0 : index
    %42 = vector.load %arg4[%c0_12, %c0_13] : memref<32x1xf32, #tpu.memory_space<vmem>>, vector<32x1xf32>
    %43 = vector.broadcast %42 : vector<32x1xf32> to vector<32x128xf32>
    %44 = arith.addf %41, %43 : vector<32x128xf32>
    %cst_14 = arith.constant 0.000000e+00 : f32
    %45 = vector.broadcast %cst_14 : f32 to vector<32x128xf32>
    %46 = arith.maximumf %44, %45 : vector<32x128xf32>
    %c0_15 = arith.constant 0 : index
    %c0_16 = arith.constant 0 : index
    %47 = vector.load %arg5[%c0_15, %c0_16] : memref<128x32xf32, #tpu.memory_space<vmem>>, vector<128x32xf32>
    %cst_17 = arith.constant dense<0.000000e+00> : vector<128x128xf32>
    %48 = tpu.matmul %47, %46, %cst_17 {dimension_numbers = #tpu.dot_dimension_numbers<[1], [0], [0], [1], [0, 0, 1, 1], [], []>} : vector<128x32xf32>, vector<32x128xf32>, vector<128x128xf32> -> vector<128x128xf32>
    %c0_18 = arith.constant 0 : index
    %c0_19 = arith.constant 0 : index
    %49 = vector.load %arg6[%c0_18, %c0_19] : memref<128x1xf32, #tpu.memory_space<vmem>>, vector<128x1xf32>
    %50 = vector.broadcast %49 : vector<128x1xf32> to vector<128x128xf32>
    %51 = arith.addf %48, %50 : vector<128x128xf32>
    %52 = arith.addf %51, %1 : vector<128x128xf32>
    %c0_20 = arith.constant 0 : index
    %c0_21 = arith.constant 0 : index
    %c0_22 = arith.constant 0 : index
    %53 = vector.load %arg7[%c0_20, %c0_21, %c0_22] : memref<1x128x128xf32, #tpu.memory_space<vmem>>, vector<1x128x128xf32>
    %54 = vector.shape_cast %53 : vector<1x128x128xf32> to vector<128x128xf32>
    %55 = vector.shape_cast %52 : vector<128x128xf32> to vector<1x128x128xf32>
    tpu.vector_store %arg7[%c0_20, %c0_21, %c0_22], %55 {strides = array<i32>} : memref<1x128x128xf32, #tpu.memory_space<vmem>>, vector<1x128x128xf32>,
    return
  }
  func.func @transform_0(%arg0: i32, %arg1: i32) -> (i32, i32, i32) {
    %c0_i32 = arith.constant 0 : i32
    %c0_i32_0 = arith.constant 0 : i32
    return %arg0, %c0_i32, %arg1 : i32, i32, i32
  }
  func.func @transform_1(%arg0: i32, %arg1: i32) -> (i32, i32) {
    %c0_i32 = arith.constant 0 : i32
    %c0_i32_0 = arith.constant 0 : i32
    %c0_i32_1 = arith.constant 0 : i32
    return %c0_i32, %c0_i32_0 : i32, i32
  }
  func.func @transform_2(%arg0: i32, %arg1: i32) -> (i32, i32) {
    %c0_i32 = arith.constant 0 : i32
    %c0_i32_0 = arith.constant 0 : i32
    %c0_i32_1 = arith.constant 0 : i32
    return %c0_i32, %c0_i32_0 : i32, i32
  }
  func.func @transform_3(%arg0: i32, %arg1: i32) -> (i32, i32) {
    %c0_i32 = arith.constant 0 : i32
    %c0_i32_0 = arith.constant 0 : i32
    %c0_i32_1 = arith.constant 0 : i32
    return %c0_i32, %c0_i32_0 : i32, i32
  }
  func.func @transform_4(%arg0: i32, %arg1: i32) -> (i32, i32) {
    %c0_i32 = arith.constant 0 : i32
    %c0_i32_0 = arith.constant 0 : i32
    %c0_i32_1 = arith.constant 0 : i32
    return %c0_i32, %c0_i32_0 : i32, i32
  }
  func.func @transform_5(%arg0: i32, %arg1: i32) -> (i32, i32, i32) {
    %c0_i32 = arith.constant 0 : i32
    %c0_i32_0 = arith.constant 0 : i32
    return %arg0, %c0_i32, %arg1 : i32, i32, i32
  }
}

</mosaic_0001>

<llo_original>
// kernel: tpu_custom_call.1
$region0: #{tpu_custom_call.1}
  #allocation0 [shape = 'u32[]', space=smem, size = 0x4, offset = 0x4, fixed_abs, tag = 'smem constant byte address 0x4 - core index']
  #allocation1 [shape = 'u32[72,128]{1,0:T(1,128)}', space=vmem, size = 0x9000, scoped, tag = 'internal scratch']
  %s0 = inlined_call_operand.vmem [shape: f32[2,128,128], index: 0, kind: input, shape index: {}]
  %s1 = inlined_call_operand.hbm [shape: f32[96,128], index: 1, kind: input, shape index: {}]
  %s2 = inlined_call_operand.vmem [shape: f32[32,1], index: 2, kind: input, shape index: {}]
  %s3 = inlined_call_operand.vmem [shape: f32[128,32], index: 3, kind: input, shape index: {}]
  %s4 = inlined_call_operand.vmem [shape: f32[128,1], index: 4, kind: input, shape index: {}]
  %s5 = inlined_call_operand.hbm [shape: f32[2,128,128], index: 5, kind: output, shape index: {}]
  %s6 = sld [smem:[#allocation0]]
  $region57: #{tpu_custom_call.1} parent=0
    _
  %s8 = ssub.s32 1, %s6
  %s9 = scalar_select 0, %s8, %s6
  $region1: #{tpu_custom_call.1} parent=0
    #allocation2 [shape = 'u8[49152]{0}', space=vmem, size = 0xc000, scoped, tag = 'input window, operand 1, single buffered']
    #allocation3 [shape = 's32[2]{0}', space=sflag, size = 0x8, scoped, tag = 'scoped memory for tpu_custom_call.1']
    #allocation4 [shape = 's32[2]{0}', space=sflag, size = 0x8, scoped, tag = 'scoped memory for tpu_custom_call.1']
    #allocation5 [shape = 'u8[131072]{0}', space=vmem, size = 0x20000, scoped, tag = 'output window, operand 0']
    %10 = vsyncpa [#allocation3], 0
    %11 = vsyncpa [#allocation4], 0
    %s12 = scalar_lea.sflag [#allocation4], 1
    %13 = vsyncpa %s12, 0
    loop: start=0, step=1, limit=4
    $region2: #{tpu_custom_call.1} parent=1 // loop_pre_header
      _
    $region3: #{tpu_custom_call.1} parent=1 // loop_header
      %s15 = sphi 0, %s19
      %p16 = scmp.ge.s32.totalorder %s15, 4
      %s22 = sphi 0, %s34
      %s23 = sphi 0, %s30
      %s24 = sphi 0, %s22
      %s25 = sphi 0, %s23
      %s26 = sphi 0, %s24
      %s27 = sphi 0, %s25
      %s39 = sphi 0, %s41
      %s42 = sphi 0, %s39
      %s43 = sphi 0, %s42
      %s59 = sphi 0, %s43
      %s63 = sphi 0, %s63
      %s65 = sphi 0, %s63
      %s66 = sphi 0, %s65
      %s80 = sphi 0, %s66
      %s84 = sphi 0, %s84
      %s86 = sphi 0, %s84
      %s87 = sphi 0, %s86
      %s101 = sphi 0, %s87
      %s105 = sphi 0, %s105
      %s107 = sphi 0, %s105
      %s108 = sphi 0, %s107
      %s122 = sphi 0, %s108
      %s126 = sphi 0, %s126
      %s128 = sphi 0, %s126
      %s129 = sphi 0, %s128
      %s143 = sphi 0, %s129
      %s151 = sphi 0, %s153
      %s154 = sphi 0, %s151
      %s155 = sphi 0, %s154
      %s171 = sphi 0, %s155
    $region4: #{tpu_custom_call.1} parent=1 // loop_header_branch
      %18 = sbr.rel (%p16) target = $region8
    $region5: #{tpu_custom_call.1} parent=1 // loop_body
      %s20 = ssub.s32 %s15, 1
      %s21 = ssub.s32 %s15, 2
      %s28 = sadd.s32 1, %s23
      %p29 = scmp.ge.s32.totalorder %s28, 1
      %s30 = scalar_select %p29, 0, %s28
      %s31 = sadd.s32 1, %s22
      %s32 = scalar_select %p29, %s31, %s22
      %p33 = scmp.ge.s32.totalorder %s32, 2
      %s34 = scalar_select %p33, 0, %s32
      %s35 = ssub.s32 %s22, %s34
      %s36 = ssub.s32 %s23, %s30
      %s37 = sor.u32 %s35, %s36
      %p38 = scmp.eq.s32.totalorder %s37, 0
      %s40 = sadd.s32 %s39, 1
      %s41 = scalar_select %p38, %s39, %s40
      %p44 = pneg %p38
      %p45 = scmp.eq.s32.totalorder %s15, 1
      %p46 = por %p44, %p45
      %p47 = scmp.ne.s32.totalorder %s39, %s42
      %p48 = scmp.eq.s32.totalorder %s15, 0
      %p49 = por %p47, %p48
      %p50 = scmp.ne.s32.totalorder %s39, %s42
      %p51 = scmp.eq.s32.totalorder %s20, 1
      %p52 = por %p50, %p51
      %p53 = scmp.ne.s32.totalorder %s42, %s43
      %p54 = scmp.eq.s32.totalorder %s20, 0
      %p55 = por %p53, %p54
      %p56 = scmp.ne.s32.totalorder %s42, %s43
      %p57 = scmp.eq.s32.totalorder %s21, 1
      %p58 = por %p56, %p57
      %p60 = scmp.ne.s32.totalorder %s43, %s59
      %p61 = scmp.eq.s32.totalorder %s21, 0
      %p62 = por %p60, %p61
      %s64 = sadd.s32 %s63, 1
      %p67 = scmp.eq.s32.totalorder %s15, 1
      %p68 = scmp.ne.s32.totalorder %s63, %s65
      %p69 = scmp.eq.s32.totalorder %s15, 0
      %p70 = por %p68, %p69
      %p71 = scmp.ne.s32.totalorder %s63, %s65
      %p72 = scmp.eq.s32.totalorder %s20, 1
      %p73 = por %p71, %p72
      %p74 = scmp.ne.s32.totalorder %s65, %s66
      %p75 = scmp.eq.s32.totalorder %s20, 0
      %p76 = por %p74, %p75
      %p77 = scmp.ne.s32.totalorder %s65, %s66
      %p78 = scmp.eq.s32.totalorder %s21, 1
      %p79 = por %p77, %p78
      %p81 = scmp.ne.s32.totalorder %s66, %s80
      %p82 = scmp.eq.s32.totalorder %s21, 0
      %p83 = por %p81, %p82
      %s85 = sadd.s32 %s84, 1
      %p88 = scmp.eq.s32.totalorder %s15, 1
      %p89 = scmp.ne.s32.totalorder %s84, %s86
      %p90 = scmp.eq.s32.totalorder %s15, 0
      %p91 = por %p89, %p90
      %p92 = scmp.ne.s32.totalorder %s84, %s86
      %p93 = scmp.eq.s32.totalorder %s20, 1
      %p94 = por %p92, %p93
      %p95 = scmp.ne.s32.totalorder %s86, %s87
      %p96 = scmp.eq.s32.totalorder %s20, 0
      %p97 = por %p95, %p96
      %p98 = scmp.ne.s32.totalorder %s86, %s87
      %p99 = scmp.eq.s32.totalorder %s21, 1
      %p100 = por %p98, %p99
      %p102 = scmp.ne.s32.totalorder %s87, %s101
      %p103 = scmp.eq.s32.totalorder %s21, 0
      %p104 = por %p102, %p103
      %s106 = sadd.s32 %s105, 1
      %p109 = scmp.eq.s32.totalorder %s15, 1
      %p110 = scmp.ne.s32.totalorder %s105, %s107
      %p111 = scmp.eq.s32.totalorder %s15, 0
      %p112 = por %p110, %p111
      %p113 = scmp.ne.s32.totalorder %s105, %s107
      %p114 = scmp.eq.s32.totalorder %s20, 1
      %p115 = por %p113, %p114
      %p116 = scmp.ne.s32.totalorder %s107, %s108
      %p117 = scmp.eq.s32.totalorder %s20, 0
      %p118 = por %p116, %p117
      %p119 = scmp.ne.s32.totalorder %s107, %s108
      %p120 = scmp.eq.s32.totalorder %s21, 1
      %p121 = por %p119, %p120
      %p123 = scmp.ne.s32.totalorder %s108, %s122
      %p124 = scmp.eq.s32.totalorder %s21, 0
      %p125 = por %p123, %p124
      %s127 = sadd.s32 %s126, 1
      %p130 = scmp.eq.s32.totalorder %s15, 1
      %p131 = scmp.ne.s32.totalorder %s126, %s128
      %p132 = scmp.eq.s32.totalorder %s15, 0
      %p133 = por %p131, %p132
      %p134 = scmp.ne.s32.totalorder %s126, %s128
      %p135 = scmp.eq.s32.totalorder %s20, 1
      %p136 = por %p134, %p135
      %p137 = scmp.ne.s32.totalorder %s128, %s129
      %p138 = scmp.eq.s32.totalorder %s20, 0
      %p139 = por %p137, %p138
      %p140 = scmp.ne.s32.totalorder %s128, %s129
      %p141 = scmp.eq.s32.totalorder %s21, 1
      %p142 = por %p140, %p141
      %p144 = scmp.ne.s32.totalorder %s129, %s143
      %p145 = scmp.eq.s32.totalorder %s21, 0
      %p146 = por %p144, %p145
      %s147 = ssub.s32 %s22, %s34
      %s148 = ssub.s32 %s23, %s30
      %s149 = sor.u32 %s147, %s148
      %p150 = scmp.eq.s32.totalorder %s149, 0
      %s152 = sadd.s32 %s151, 1
      %s153 = scalar_select %p150, %s151, %s152
      %p156 = pneg %p150
      %p157 = scmp.eq.s32.totalorder %s15, 1
      %p158 = por %p156, %p157
      %p159 = scmp.ne.s32.totalorder %s151, %s154
      %p160 = scmp.eq.s32.totalorder %s15, 0
      %p161 = por %p159, %p160
      %p162 = scmp.ne.s32.totalorder %s151, %s154
      %p163 = scmp.eq.s32.totalorder %s20, 1
      %p164 = por %p162, %p163
      %p165 = scmp.ne.s32.totalorder %s154, %s155
      %p166 = scmp.eq.s32.totalorder %s20, 0
      %p167 = por %p165, %p166
      %p168 = scmp.ne.s32.totalorder %s154, %s155
      %p169 = scmp.eq.s32.totalorder %s21, 1
      %p170 = por %p168, %p169
      %p172 = scmp.ne.s32.totalorder %s155, %s171
      %p173 = scmp.eq.s32.totalorder %s21, 0
      %p174 = por %p172, %p173
      %p175 = scmp.le.s32.totalorder 1, %s15
      %p176 = scmp.lt.s32.totalorder %s15, 3
      %p177 = pnand %p175, %p176
      %p178 = pneg %p177
      // Predicated region
      $region9: #{tpu_custom_call.1} parent=5 // pred_check
        _
      $region10: #{tpu_custom_call.1} parent=5 // pred_check_branch
        %180 = sbr.rel (%p177) target = $region12
      $region11: #{tpu_custom_call.1} parent=5 // pred_region
        %s181 = ssub.s32 %s15, 1
        // Predicated region
        $region13: #{tpu_custom_call.1} parent=11 // pred_check
          %p182 = pneg %p76
        $region14: #{tpu_custom_call.1} parent=11 // pred_check_branch
          %184 = sbr.rel (%p182) target = $region16
        $region15: #{tpu_custom_call.1} parent=11 // pred_region
          %186 = vsyncadd [#allocation3], 0
          %s187 = sshll.u32 %s1, 4
          %s188 = int_to_ptr.hbm [resolvable:$true] %s187
          %s189 = sshll.u32 [#allocation2], 4
          %s190 = int_to_ptr.vmem [resolvable:$true] %s189
          %195 = dma.hbm_to_vmem [thread:$0]  %s188, 1536, %s190, [#allocation3], 128, 128, 8
        $region16: #{tpu_custom_call.1} parent=11 // pred_fallthru
          _
        // Predicated region
        $region17: #{tpu_custom_call.1} parent=11 // pred_check
          %p196 = pneg %p97
        $region18: #{tpu_custom_call.1} parent=11 // pred_check_branch
          %198 = sbr.rel (%p196) target = $region20
        $region19: #{tpu_custom_call.1} parent=11 // pred_region
          _
        $region20: #{tpu_custom_call.1} parent=11 // pred_fallthru
          _
        // Predicated region
        $region21: #{tpu_custom_call.1} parent=11 // pred_check
          %p199 = pneg %p118
        $region22: #{tpu_custom_call.1} parent=11 // pred_check_branch
          %201 = sbr.rel (%p199) target = $region24
        $region23: #{tpu_custom_call.1} parent=11 // pred_region
          _
        $region24: #{tpu_custom_call.1} parent=11 // pred_fallthru
          _
        // Predicated region
        $region25: #{tpu_custom_call.1} parent=11 // pred_check
          %p202 = pneg %p139
        $region26: #{tpu_custom_call.1} parent=11 // pred_check_branch
          %204 = sbr.rel (%p202) target = $region28
        $region27: #{tpu_custom_call.1} parent=11 // pred_region
          _
        $region28: #{tpu_custom_call.1} parent=11 // pred_fallthru
          _
      $region12: #{tpu_custom_call.1} parent=5 // pred_fallthru
        _
      %p205 = scmp.lt.s32.totalorder %s15, 2
      // Predicated region
      $region29: #{tpu_custom_call.1} parent=5 // pred_check
        %p206 = pneg %p205
      $region30: #{tpu_custom_call.1} parent=5 // pred_check_branch
        %208 = sbr.rel (%p206) target = $region32
      $region31: #{tpu_custom_call.1} parent=5 // pred_region
        // Predicated region
        $region33: #{tpu_custom_call.1} parent=31 // pred_check
          %p209 = pneg %p49
        $region34: #{tpu_custom_call.1} parent=31 // pred_check_branch
          %211 = sbr.rel (%p209) target = $region36
        $region35: #{tpu_custom_call.1} parent=31 // pred_region
          %p212 = scmp.lt.s32.totalorder %s22, 1
          %s213 = scalar_select %p212, %s22, 1
          %p214 = scmp.lt.s32.totalorder %s23, 0
          %s215 = scalar_select %p214, %s23, 0
          %s216 = smul.addr %s213, 16
          %s217 = sadd.s32 %s215, %s216
          %s218 = smul.addr %s217, 8
          %s219 = scalar_lea.vmem %s0, %s218
        $region36: #{tpu_custom_call.1} parent=31 // pred_fallthru
          _
      $region32: #{tpu_custom_call.1} parent=5 // pred_fallthru
        _
      %p220 = scmp.le.s32.totalorder 1, %s15
      %p221 = scmp.lt.s32.totalorder %s15, 3
      %p222 = pnand %p220, %p221
      %p223 = pneg %p222
      // Predicated region
      $region37: #{tpu_custom_call.1} parent=5 // pred_check
        _
      $region38: #{tpu_custom_call.1} parent=5 // pred_check_branch
        %225 = sbr.rel (%p222) target = $region40
      $region39: #{tpu_custom_call.1} parent=5 // pred_region
        %s226 = ssub.s32 %s15, 1
        // Predicated region
        $region41: #{tpu_custom_call.1} parent=39 // pred_check
          %p227 = pneg %p76
        $region42: #{tpu_custom_call.1} parent=39 // pred_check_branch
          %229 = sbr.rel (%p227) target = $region44
        $region43: #{tpu_custom_call.1} parent=39 // pred_region
          %231 = dma.done [#allocation3], 1536
        $region44: #{tpu_custom_call.1} parent=39 // pred_fallthru
          _
        %p232 = scmp.lt.s32.totalorder %s24, 1
        %s233 = scalar_select %p232, %s24, 1
        %p234 = scmp.lt.s32.totalorder %s25, 0
        %s235 = scalar_select %p234, %s25, 0
        %s236 = smul.addr %s233, 16
        %s237 = sadd.s32 %s235, %s236
        %s238 = smul.addr %s237, 8
        %s239 = scalar_lea.vmem %s0, %s238
        %p240 = pneg %p55
        %p241 = pneg %p52
        %p242 = pneg %p76
        %p243 = pneg %p73
        %p244 = pneg %p97
        %p245 = pneg %p94
        %p246 = pneg %p118
        %p247 = pneg %p115
        %p248 = pneg %p139
        %p249 = pneg %p136
        %p250 = pneg %p167
        %p251 = pneg %p164
        %s252 = sand.u32 %s154, 1
        %s253 = scalar_lea.sflag [#allocation4], %s252
        %s254 = sand.u32 %s154, 1
        %s255 = smul.addr %s254, 128
        %s256 = scalar_lea.vmem [#allocation5], %s255
        %p257 = scmp.lt.s32.totalorder %s24, 1
        %s258 = scalar_select %p257, %s24, 1
        %p259 = scmp.lt.s32.totalorder %s25, 0
        %s260 = scalar_select %p259, %s25, 0
        %s261 = smul.addr %s258, 16
        %s262 = sadd.s32 %s260, %s261
        %s263 = smul.addr %s262, 8
        %s264 = scalar_lea.vmem %s0, %s263
        %v265 = vld [vmem:[%s264] sm:$0xff]
        %v266 = vld [vmem:[%s264 + $0x8] sm:$0xff]
        %v267 = vld [vmem:[%s264 + $0x10] sm:$0xff]
        %v268 = vld [vmem:[%s264 + $0x18] sm:$0xff]
        %v269 = vld [vmem:[%s264 + $0x20] sm:$0xff]
        %v270 = vld [vmem:[%s264 + $0x28] sm:$0xff]
        %v271 = vld [vmem:[%s264 + $0x30] sm:$0xff]
        %v272 = vld [vmem:[%s264 + $0x38] sm:$0xff]
        %v273 = vld [vmem:[%s264 + $0x40] sm:$0xff]
        %v274 = vld [vmem:[%s264 + $0x48] sm:$0xff]
        %v275 = vld [vmem:[%s264 + $0x50] sm:$0xff]
        %v276 = vld [vmem:[%s264 + $0x58] sm:$0xff]
        %v277 = vld [vmem:[%s264 + $0x60] sm:$0xff]
        %v278 = vld [vmem:[%s264 + $0x68] sm:$0xff]
        %v279 = vld [vmem:[%s264 + $0x70] sm:$0xff]
        %v280 = vld [vmem:[%s264 + $0x78] sm:$0xff]
        %v281 = vmax.f32 %v265, 0.0
        %v282 = vmax.f32 %v266, 0.0
        %v283 = vmax.f32 %v267, 0.0
        %v284 = vmax.f32 %v268, 0.0
        %v285 = vmax.f32 %v269, 0.0
        %v286 = vmax.f32 %v270, 0.0
        %v287 = vmax.f32 %v271, 0.0
        %v288 = vmax.f32 %v272, 0.0
        %v289 = vmax.f32 %v273, 0.0
        %v290 = vmax.f32 %v274, 0.0
        %v291 = vmax.f32 %v275, 0.0
        %v292 = vmax.f32 %v276, 0.0
        %v293 = vmax.f32 %v277, 0.0
        %v294 = vmax.f32 %v278, 0.0
        %v295 = vmax.f32 %v279, 0.0
        %v296 = vmax.f32 %v280, 0.0
        %v297 = vld [vmem:[#allocation2] sm:$0xff]
        %v298 = vld [vmem:[#allocation2 + $0x8] sm:$0xff]
        %v299 = vld [vmem:[#allocation2 + $0x10] sm:$0xff]
        %v300 = vld [vmem:[#allocation2 + $0x18] sm:$0xff]
        %v301 = vld [vmem:[#allocation2 + $0x20] sm:$0xff]
        %v302 = vld [vmem:[#allocation2 + $0x28] sm:$0xff]
        %v303 = vld [vmem:[#allocation2 + $0x30] sm:$0xff]
        %v304 = vld [vmem:[#allocation2 + $0x38] sm:$0xff]
        %v305 = vld [vmem:[#allocation2 + $0x40] sm:$0xff]
        %v306 = vld [vmem:[#allocation2 + $0x48] sm:$0xff]
        %v307 = vld [vmem:[#allocation2 + $0x50] sm:$0xff]
        %v308 = vld [vmem:[#allocation2 + $0x58] sm:$0xff]
        %309 = vmatpush.msra.mxu0 %v296
        %310 = vmatpush.msra.mxu0 %v295
        %311 = vmatpush.msra.mxu0 %v294
        %312 = vmatpush.msra.mxu0 %v293
        %313 = vmatpush.msra.mxu0 %v292
        %314 = vmatpush.msra.mxu0 %v291
        %315 = vmatpush.msra.mxu0 %v290
        %316 = vmatpush.msra.mxu0 %v289
        %317 = vmatpush.msra.mxu0 %v288
        %318 = vmatpush.msra.mxu0 %v287
        %319 = vmatpush.msra.mxu0 %v286
        %320 = vmatpush.msra.mxu0 %v285
        %321 = vmatpush.msra.mxu0 %v284
        %322 = vmatpush.msra.mxu0 %v283
        %323 = vmatpush.msra.mxu0 %v282
        %324 = vmatpush.msra.mxu0 %v281
        %325 = vmatmul.f32.gmra.mxu0 %v297
        %v326 = vpop.f32.mrf.mxu0
        %v327 = vadd.f32 0.0, %v326
        %328 = vmatmul.f32.gmra.mxu0 %v298
        %v329 = vpop.f32.mrf.mxu0
        %v330 = vadd.f32 0.0, %v329
        %331 = vmatmul.f32.gmra.mxu0 %v299
        %v332 = vpop.f32.mrf.mxu0
        %v333 = vadd.f32 0.0, %v332
        %334 = vmatmul.f32.gmra.mxu0 %v300
        %v335 = vpop.f32.mrf.mxu0
        %v336 = vadd.f32 0.0, %v335
        %337 = vmatmul.f32.gmra.mxu0 %v301
        %v338 = vpop.f32.mrf.mxu0
        %v339 = vadd.f32 0.0, %v338
        %340 = vmatmul.f32.gmra.mxu0 %v302
        %v341 = vpop.f32.mrf.mxu0
        %v342 = vadd.f32 0.0, %v341
        %343 = vmatmul.f32.gmra.mxu0 %v303
        %v344 = vpop.f32.mrf.mxu0
        %v345 = vadd.f32 0.0, %v344
        %346 = vmatmul.f32.gmra.mxu0 %v304
        %v347 = vpop.f32.mrf.mxu0
        %v348 = vadd.f32 0.0, %v347
        %349 = vmatmul.f32.gmra.mxu0 %v305
        %v350 = vpop.f32.mrf.mxu0
        %v351 = vadd.f32 0.0, %v350
        %352 = vmatmul.f32.gmra.mxu0 %v306
        %v353 = vpop.f32.mrf.mxu0
        %v354 = vadd.f32 0.0, %v353
        %355 = vmatmul.f32.gmra.mxu0 %v307
        %v356 = vpop.f32.mrf.mxu0
        %v357 = vadd.f32 0.0, %v356
        %358 = vmatmul.f32.gmra.mxu0 %v308
        %v359 = vpop.f32.mrf.mxu0
        %v360 = vadd.f32 0.0, %v359
        %361 = vdwg.mxu0
        %v362 = vlaneseq
        %v363 = vand.u32 %v362, 127
        %vm364 = vcmp.lt.s32.totalorder %v363, 0
        %v365 = vsub.s32 0, %v363
        %v366 = vsel %vm364, %v365, %v363
        %v367 = vshrl.u32 %v366, 4
        %v368 = vand.u32 %v366, 15
        %v369 = vsub.s32 0, %v368
        %v370 = vsel %vm364, %v369, %v368
        %vm371 = vcmp.ne.s32.totalorder %v370, 0
        %vm372 = vcmp.lt.s32.totalorder %v370, 0
        %vm373 = vmand %vm372, %vm371
        %v374 = vadd.s32 %v370, 16
        %v375 = vsel %vm373, %v374, %v370
        %376 = vrot.lane.b32.xlu0 %v327, 1
        %v377 = vpop.permute.xlu0 %376
        %378 = vrot.lane.b32.xlu0 %v330, 1
        %v379 = vpop.permute.xlu0 %378
        %380 = vrot.lane.b32.xlu0 %v333, 1
        %v381 = vpop.permute.xlu0 %380
        %382 = vrot.lane.b32.xlu0 %v336, 1
        %v383 = vpop.permute.xlu0 %382
        %384 = vrot.lane.b32.xlu0 %v351, 127
        %v385 = vpop.permute.xlu0 %384
        %386 = vrot.lane.b32.xlu0 %v354, 127
        %v387 = vpop.permute.xlu0 %386
        %388 = vrot.lane.b32.xlu0 %v357, 127
        %v389 = vpop.permute.xlu0 %388
        %390 = vrot.lane.b32.xlu0 %v360, 127
        %v391 = vpop.permute.xlu0 %390
        %vm392 = vcmp.eq.s32.totalorder %v375, 0
        %v393 = vsel %vm392, 1, 0
        %vm394 = vcmp.eq.s32.totalorder %v393, 1
        %v395 = vsel %vm394, 0.0, %v377
        %v396 = vsel %vm394, 0.0, %v379
        %v397 = vsel %vm394, 0.0, %v381
        %v398 = vsel %vm394, 0.0, %v383
        %v399 = vadd.f32 %v339, %v395
        %v400 = vadd.f32 %v342, %v396
        %v401 = vadd.f32 %v345, %v397
        %v402 = vadd.f32 %v348, %v398
        %vm403 = vcmp.eq.s32.totalorder %v375, 15
        %v404 = vsel %vm403, 1, 0
        %vm405 = vcmp.eq.s32.totalorder %v404, 1
        %v406 = vsel %vm405, 0.0, %v385
        %v407 = vsel %vm405, 0.0, %v387
        %v408 = vsel %vm405, 0.0, %v389
        %v409 = vsel %vm405, 0.0, %v391
        %v410 = vadd.f32 %v399, %v406
        %v411 = vadd.f32 %v400, %v407
        %v412 = vadd.f32 %v401, %v408
        %v413 = vadd.f32 %v402, %v409
        %v414 = vld [vmem:[%s2] sm:$0xff]
        %v415 = vld [vmem:[%s2 + $0x8] sm:$0xff]
        %v416 = vld [vmem:[%s2 + $0x10] sm:$0xff]
        %v417 = vld [vmem:[%s2 + $0x18] sm:$0xff]
        %419 = vset.pattern.permute.xlu0 0
        %420 = vperm.xlu0 %419, %v414
        %v421 = vpop.permute.xlu0 %420
        %424 = vset.pattern.permute.xlu0 0
        %425 = vperm.xlu0 %424, %v415
        %v426 = vpop.permute.xlu0 %425
        %429 = vset.pattern.permute.xlu0 0
        %430 = vperm.xlu0 %429, %v416
        %v431 = vpop.permute.xlu0 %430
        %434 = vset.pattern.permute.xlu0 0
        %435 = vperm.xlu0 %434, %v417
        %v436 = vpop.permute.xlu0 %435
        %v438 = vadd.f32 %v410, %v421
        %v439 = vadd.f32 %v411, %v426
        %v440 = vadd.f32 %v412, %v431
        %v441 = vadd.f32 %v413, %v436
        %v442 = vmax.f32 %v438, 0.0
        %v443 = vmax.f32 %v439, 0.0
        %v444 = vmax.f32 %v440, 0.0
        %v445 = vmax.f32 %v441, 0.0
        %v446 = vld [vmem:[%s3] sm:$0xff]
        %v447 = vld [vmem:[%s3 + $0x8] sm:$0xff]
        %v448 = vld [vmem:[%s3 + $0x10] sm:$0xff]
        %v449 = vld [vmem:[%s3 + $0x18] sm:$0xff]
        %v450 = vld [vmem:[%s3 + $0x20] sm:$0xff]
        %v451 = vld [vmem:[%s3 + $0x28] sm:$0xff]
        %v452 = vld [vmem:[%s3 + $0x30] sm:$0xff]
        %v453 = vld [vmem:[%s3 + $0x38] sm:$0xff]
        %v454 = vld [vmem:[%s3 + $0x40] sm:$0xff]
        %v455 = vld [vmem:[%s3 + $0x48] sm:$0xff]
        %v456 = vld [vmem:[%s3 + $0x50] sm:$0xff]
        %v457 = vld [vmem:[%s3 + $0x58] sm:$0xff]
        %v458 = vld [vmem:[%s3 + $0x60] sm:$0xff]
        %v459 = vld [vmem:[%s3 + $0x68] sm:$0xff]
        %v460 = vld [vmem:[%s3 + $0x70] sm:$0xff]
        %v461 = vld [vmem:[%s3 + $0x78] sm:$0xff]
        %v462 = vld [vmem:[%s4] sm:$0xff]
        %v463 = vld [vmem:[%s4 + $0x8] sm:$0xff]
        %v464 = vld [vmem:[%s4 + $0x10] sm:$0xff]
        %v465 = vld [vmem:[%s4 + $0x18] sm:$0xff]
        %v466 = vld [vmem:[%s4 + $0x20] sm:$0xff]
        %v467 = vld [vmem:[%s4 + $0x28] sm:$0xff]
        %v468 = vld [vmem:[%s4 + $0x30] sm:$0xff]
        %v469 = vld [vmem:[%s4 + $0x38] sm:$0xff]
        %v470 = vld [vmem:[%s4 + $0x40] sm:$0xff]
        %v471 = vld [vmem:[%s4 + $0x48] sm:$0xff]
        %v472 = vld [vmem:[%s4 + $0x50] sm:$0xff]
        %v473 = vld [vmem:[%s4 + $0x58] sm:$0xff]
        %v474 = vld [vmem:[%s4 + $0x60] sm:$0xff]
        %v475 = vld [vmem:[%s4 + $0x68] sm:$0xff]
        %v476 = vld [vmem:[%s4 + $0x70] sm:$0xff]
        %v477 = vld [vmem:[%s4 + $0x78] sm:$0xff]
        %479 = vset.pattern.permute.xlu0 0
        %480 = vperm.xlu0 %479, %v462
        %v481 = vpop.permute.xlu0 %480
        %484 = vset.pattern.permute.xlu0 0
        %485 = vperm.xlu0 %484, %v463
        %v486 = vpop.permute.xlu0 %485
        %489 = vset.pattern.permute.xlu0 0
        %490 = vperm.xlu0 %489, %v464
        %v491 = vpop.permute.xlu0 %490
        %494 = vset.pattern.permute.xlu0 0
        %495 = vperm.xlu0 %494, %v465
        %v496 = vpop.permute.xlu0 %495
        %499 = vset.pattern.permute.xlu0 0
        %500 = vperm.xlu0 %499, %v466
        %v501 = vpop.permute.xlu0 %500
        %504 = vset.pattern.permute.xlu0 0
        %505 = vperm.xlu0 %504, %v467
        %v506 = vpop.permute.xlu0 %505
        %509 = vset.pattern.permute.xlu0 0
        %510 = vperm.xlu0 %509, %v468
        %v511 = vpop.permute.xlu0 %510
        %514 = vset.pattern.permute.xlu0 0
        %515 = vperm.xlu0 %514, %v469
        %v516 = vpop.permute.xlu0 %515
        %519 = vset.pattern.permute.xlu0 0
        %520 = vperm.xlu0 %519, %v470
        %v521 = vpop.permute.xlu0 %520
        %524 = vset.pattern.permute.xlu0 0
        %525 = vperm.xlu0 %524, %v471
        %v526 = vpop.permute.xlu0 %525
        %529 = vset.pattern.permute.xlu0 0
        %530 = vperm.xlu0 %529, %v472
        %v531 = vpop.permute.xlu0 %530
        %534 = vset.pattern.permute.xlu0 0
        %535 = vperm.xlu0 %534, %v473
        %v536 = vpop.permute.xlu0 %535
        %539 = vset.pattern.permute.xlu0 0
        %540 = vperm.xlu0 %539, %v474
        %v541 = vpop.permute.xlu0 %540
        %544 = vset.pattern.permute.xlu0 0
        %545 = vperm.xlu0 %544, %v475
        %v546 = vpop.permute.xlu0 %545
        %549 = vset.pattern.permute.xlu0 0
        %550 = vperm.xlu0 %549, %v476
        %v551 = vpop.permute.xlu0 %550
        %554 = vset.pattern.permute.xlu0 0
        %555 = vperm.xlu0 %554, %v477
        %v556 = vpop.permute.xlu0 %555
        %vm558 = vcmask 261120
        %v560 = vsel %vm558, %v446, 0
        %v563 = vsel %vm558, %v447, 0
        %v566 = vsel %vm558, %v448, 0
        %v569 = vsel %vm558, %v449, 0
        %v572 = vsel %vm558, %v450, 0
        %v575 = vsel %vm558, %v451, 0
        %v578 = vsel %vm558, %v452, 0
        %v581 = vsel %vm558, %v453, 0
        %v584 = vsel %vm558, %v454, 0
        %v587 = vsel %vm558, %v455, 0
        %v590 = vsel %vm558, %v456, 0
        %v593 = vsel %vm558, %v457, 0
        %v596 = vsel %vm558, %v458, 0
        %v599 = vsel %vm558, %v459, 0
        %v602 = vsel %vm558, %v460, 0
        %v605 = vsel %vm558, %v461, 0
        %607 = vmatpush.msra.mxu0 0.0
        %608 = vmatpush.msra.mxu0 0.0
        %609 = vmatpush.msra.mxu0 0.0
        %610 = vmatpush.msra.mxu0 0.0
        %611 = vmatpush.msra.mxu0 0.0
        %612 = vmatpush.msra.mxu0 0.0
        %613 = vmatpush.msra.mxu0 0.0
        %614 = vmatpush.msra.mxu0 0.0
        %615 = vmatpush.msra.mxu0 0.0
        %616 = vmatpush.msra.mxu0 0.0
        %617 = vmatpush.msra.mxu0 0.0
        %618 = vmatpush.msra.mxu0 0.0
        %619 = vmatpush.msra.mxu0 %v445
        %620 = vmatpush.msra.mxu0 %v444
        %621 = vmatpush.msra.mxu0 %v443
        %622 = vmatpush.msra.mxu0 %v442
        %623 = vmatmul.f32.gmra.mxu0 %v560
        %v624 = vpop.f32.mrf.mxu0
        %v625 = vadd.f32 %v481, %v624
        %626 = vmatmul.f32.gmra.mxu0 %v563
        %v627 = vpop.f32.mrf.mxu0
        %v628 = vadd.f32 %v486, %v627
        %629 = vmatmul.f32.gmra.mxu0 %v566
        %v630 = vpop.f32.mrf.mxu0
        %v631 = vadd.f32 %v491, %v630
        %632 = vmatmul.f32.gmra.mxu0 %v569
        %v633 = vpop.f32.mrf.mxu0
        %v634 = vadd.f32 %v496, %v633
        %635 = vmatmul.f32.gmra.mxu0 %v572
        %v636 = vpop.f32.mrf.mxu0
        %v637 = vadd.f32 %v501, %v636
        %638 = vmatmul.f32.gmra.mxu0 %v575
        %v639 = vpop.f32.mrf.mxu0
        %v640 = vadd.f32 %v506, %v639
        %641 = vmatmul.f32.gmra.mxu0 %v578
        %v642 = vpop.f32.mrf.mxu0
        %v643 = vadd.f32 %v511, %v642
        %644 = vmatmul.f32.gmra.mxu0 %v581
        %v645 = vpop.f32.mrf.mxu0
        %v646 = vadd.f32 %v516, %v645
        %647 = vmatmul.f32.gmra.mxu0 %v584
        %v648 = vpop.f32.mrf.mxu0
        %v649 = vadd.f32 %v521, %v648
        %650 = vmatmul.f32.gmra.mxu0 %v587
        %v651 = vpop.f32.mrf.mxu0
        %v652 = vadd.f32 %v526, %v651
        %653 = vmatmul.f32.gmra.mxu0 %v590
        %v654 = vpop.f32.mrf.mxu0
        %v655 = vadd.f32 %v531, %v654
        %656 = vmatmul.f32.gmra.mxu0 %v593
        %v657 = vpop.f32.mrf.mxu0
        %v658 = vadd.f32 %v536, %v657
        %659 = vmatmul.f32.gmra.mxu0 %v596
        %v660 = vpop.f32.mrf.mxu0
        %v661 = vadd.f32 %v541, %v660
        %662 = vmatmul.f32.gmra.mxu0 %v599
        %v663 = vpop.f32.mrf.mxu0
        %v664 = vadd.f32 %v546, %v663
        %665 = vmatmul.f32.gmra.mxu0 %v602
        %v666 = vpop.f32.mrf.mxu0
        %v667 = vadd.f32 %v551, %v666
        %668 = vmatmul.f32.gmra.mxu0 %v605
        %v669 = vpop.f32.mrf.mxu0
        %v670 = vadd.f32 %v556, %v669
        %671 = vdwg.mxu0
        %v672 = vadd.f32 %v625, %v265
        %v673 = vadd.f32 %v628, %v266
        %v674 = vadd.f32 %v631, %v267
        %v675 = vadd.f32 %v634, %v268
        %v676 = vadd.f32 %v637, %v269
        %v677 = vadd.f32 %v640, %v270
        %v678 = vadd.f32 %v643, %v271
        %v679 = vadd.f32 %v646, %v272
        %v680 = vadd.f32 %v649, %v273
        %v681 = vadd.f32 %v652, %v274
        %v682 = vadd.f32 %v655, %v275
        %v683 = vadd.f32 %v658, %v276
        %v684 = vadd.f32 %v661, %v277
        %v685 = vadd.f32 %v664, %v278
        %v686 = vadd.f32 %v667, %v279
        %v687 = vadd.f32 %v670, %v280
        %688 = vst [vmem:[%s256] sm:$0xff] %v672
        %689 = vst [vmem:[%s256 + $0x8] sm:$0xff] %v673
        %690 = vst [vmem:[%s256 + $0x10] sm:$0xff] %v674
        %691 = vst [vmem:[%s256 + $0x18] sm:$0xff] %v675
        %692 = vst [vmem:[%s256 + $0x20] sm:$0xff] %v676
        %693 = vst [vmem:[%s256 + $0x28] sm:$0xff] %v677
        %694 = vst [vmem:[%s256 + $0x30] sm:$0xff] %v678
        %695 = vst [vmem:[%s256 + $0x38] sm:$0xff] %v679
        %696 = vst [vmem:[%s256 + $0x40] sm:$0xff] %v680
        %697 = vst [vmem:[%s256 + $0x48] sm:$0xff] %v681
        %698 = vst [vmem:[%s256 + $0x50] sm:$0xff] %v682
        %699 = vst [vmem:[%s256 + $0x58] sm:$0xff] %v683
        %700 = vst [vmem:[%s256 + $0x60] sm:$0xff] %v684
        %701 = vst [vmem:[%s256 + $0x68] sm:$0xff] %v685
        %702 = vst [vmem:[%s256 + $0x70] sm:$0xff] %v686
        %703 = vst [vmem:[%s256 + $0x78] sm:$0xff] %v687
        %s704 = sand.u32 %s154, 1
        %s705 = scalar_lea.sflag [#allocation4], %s704
        %s706 = sand.u32 %s154, 1
        %s707 = smul.addr %s706, 128
        %s708 = scalar_lea.vmem [#allocation5], %s707
        // Predicated region
        $region45: #{tpu_custom_call.1} parent=39 // pred_check
          %p709 = pneg %p164
        $region46: #{tpu_custom_call.1} parent=39 // pred_check_branch
          %711 = sbr.rel (%p709) target = $region48
        $region47: #{tpu_custom_call.1} parent=39 // pred_region
          %713 = vsyncadd %s705, 0
          %s714 = smul.addr %s24, 16
          %s715 = sadd.s32 %s25, %s714
          %s716 = smul.addr %s715, 8
          %s717 = scalar_lea.hbm %s5, %s716
          %s718 = sshll.u32 %s708, 4
          %s719 = int_to_ptr.vmem [resolvable:$true] %s718
          %s720 = sshll.u32 %s717, 4
          %s721 = int_to_ptr.hbm [resolvable:$true] %s720
          %726 = dma.vmem_to_hbm [thread:$0]  %s719, 2048, %s721, %s705, 128, 128, 8
        $region48: #{tpu_custom_call.1} parent=39 // pred_fallthru
          _
      $region40: #{tpu_custom_call.1} parent=5 // pred_fallthru
        _
      %p727 = scmp.le.s32.totalorder 2, %s15
      // Predicated region
      $region49: #{tpu_custom_call.1} parent=5 // pred_check
        %p728 = pneg %p727
      $region50: #{tpu_custom_call.1} parent=5 // pred_check_branch
        %730 = sbr.rel (%p728) target = $region52
      $region51: #{tpu_custom_call.1} parent=5 // pred_region
        %s731 = ssub.s32 %s15, 2
        // Predicated region
        $region53: #{tpu_custom_call.1} parent=51 // pred_check
          %p732 = pneg %p170
        $region54: #{tpu_custom_call.1} parent=51 // pred_check_branch
          %734 = sbr.rel (%p732) target = $region56
        $region55: #{tpu_custom_call.1} parent=51 // pred_region
          %s735 = sand.u32 %s155, 1
          %s736 = scalar_lea.sflag [#allocation4], %s735
          %s737 = sand.u32 %s155, 1
          %s738 = smul.addr %s737, 128
          %s739 = scalar_lea.vmem [#allocation5], %s738
          %741 = dma.done %s736, 2048
        $region56: #{tpu_custom_call.1} parent=51 // pred_fallthru
          _
      $region52: #{tpu_custom_call.1} parent=5 // pred_fallthru
        _
    $region6: #{tpu_custom_call.1} parent=1 // loop_footer
      %s19 = sadd.s32 1, %s15
    $region7: #{tpu_custom_call.1} parent=1 // loop_footer_branch
      %14 = sbr.rel target = $region3
    $region8: #{tpu_custom_call.1} parent=1 // loop_exit
      _
    %742 = vsyncpa [#allocation3], 1
    %s743 = scalar_lea.sflag [#allocation3], 1
    %744 = vsyncpa %s743, 1
    %745 = vsyncpa [#allocation4], 1
    %s746 = scalar_lea.sflag [#allocation4], 1
    %747 = vsyncpa %s746, 1

</llo_original>
